<compile_context>
chip_gen: v6e
topology: v6e:2x2x1
jax: 0.10.0
libtpu: 0.0.40
codegen_flags: <defaults>
</compile_context>

<pallas_src>
import jax
import jax.numpy as jnp
from jax.experimental import pallas as pl
from jax.experimental.pallas import tpu as pltpu


HIDDEN = 64  # per-network hidden width; fused width = 2 * HIDDEN = 128 lanes


# ---------------------------------------------------------------------------
# Kernel
# ---------------------------------------------------------------------------
def airl_discrim_kernel(x_ref, W1_ref, b1_ref, W2_ref, b2_ref, W3_ref, b3_ref,
                        out_ref):
    _, tb, dp2 = x_ref.shape

    xin = x_ref[...]                              # (2, TB, D+2)
    # Leading-dim merge: rows [0, tb) = states, rows [tb, 2tb) = next_states.
    # Layout-preserving (tb % 8 == 0) -> no copy.
    x = xin.reshape(2 * tb, dp2)

    # Layer 1 (K = D+2, tiny) -- f32.  Aux columns hit zero rows of W1f.
    h1 = jnp.maximum(
        jnp.dot(x, W1_ref[...], preferred_element_type=jnp.float32)
        + b1_ref[...], 0.0)                       # (2TB, 128)

    # Layer 2 (128x128, dominant) -- bf16 operands, f32 accumulation.
    h2 = jnp.maximum(
        jnp.dot(h1.astype(jnp.bfloat16), W2_ref[...],
                preferred_element_type=jnp.float32)
        + b2_ref[...], 0.0)                       # (2TB, 128)

    # Layer 3 (N = 2, tiny) -- f32.
    o = (jnp.dot(h2, W3_ref[...], preferred_element_type=jnp.float32)
         + b3_ref[...])                           # (2TB, 2)

    gv = o[:tb, 0:1]                              # g(s) - h(s)             (TB, 1)
    nv = o[tb:, 1:2]                              # h(s')                   (TB, 1)
    a0 = xin[0, :, dp2 - 2:dp2 - 1]               # gamma * (1 - int(done)) (TB, 1)
    a1 = xin[0, :, dp2 - 1:dp2]                   # log_pi                  (TB, 1)

    val = gv + a0 * nv - a1                       # (TB, 1)
    # Lane-dense writeback: one full-width (1, TB) row per step (XLU transpose,
    # off the VPU/MXU critical path) instead of TB/8 masked 1-lane stores.
    out_ref[0] = jnp.transpose(val)


# ---------------------------------------------------------------------------
# Weight fusion (done once, outside the kernel)
# ---------------------------------------------------------------------------
def fuse_params(params):
    (gW1, gb1, gW2, gb2, gW3, gb3,
     hW1, hb1, hW2, hb2, hW3, hb3) = params
    H = gW1.shape[1]

    W1f = jnp.concatenate([gW1, hW1], axis=1)                  # (D, 2H)
    # Two extra zero rows so the packed aux columns contribute nothing.
    W1f = jnp.concatenate([W1f, jnp.zeros((2, 2 * H), jnp.float32)], axis=0)
    b1f = jnp.concatenate([gb1, hb1], axis=1)                  # (1, 2H)

    W2f = jnp.zeros((2 * H, 2 * H), jnp.float32)
    W2f = W2f.at[:H, :H].set(gW2).at[H:, H:].set(hW2)          # block-diag
    b2f = jnp.concatenate([gb2, hb2], axis=1)                  # (1, 2H)

    # col 0 -> g(x) - h(x);  col 1 -> h(x)
    col0 = jnp.concatenate([gW3, -hW3], axis=0)                # (2H, 1)
    col1 = jnp.concatenate([jnp.zeros_like(gW3), hW3], axis=0)
    W3c = jnp.concatenate([col0, col1], axis=1)                # (2H, 2)
    b3c = jnp.concatenate([gb3 - hb3, hb3], axis=1)            # (1, 2)

    # bf16 only for the dominant 128x128 layer-2 matmul (f32 accumulation).
    return W1f, b1f, W2f.astype(jnp.bfloat16), b2f, W3c, b3c


def _round_up(x, m):
    return ((x + m - 1) // m) * m


# ---------------------------------------------------------------------------
# Wrapper
# ---------------------------------------------------------------------------
def airl_discrim_forward(states, dones, log_pis, next_states, params, gamma,
                         max_tile=1024):
    B, D = states.shape
    dp2 = D + 2
    W1f, b1f, W2f, b2f, W3c, b3c = fuse_params(params)

    # Batch tile: multiple of 8 sublanes.  Prefer >= 2 grid steps so the
    # "parallel" batch axis can shard across both TensorCores on v7x
    # (harmless no-op on v5e/v6e).
    if B > 8:
        tb = min(max_tile, _round_up((B + 1) // 2, 8))
    else:
        tb = 8
    bp = _round_up(B, tb)
    n_tiles = bp // tb
    pad = bp - B

    # Single input slab (one DMA per step):
    #   plane 0 = [states | gamma*(1-int(done)) | log_pi]
    #   plane 1 = [next_states | 0 | 0]
    not_done = 1.0 - dones.reshape(B).astype(jnp.int32).astype(jnp.float32)
    a0 = (gamma * not_done).astype(jnp.float32)
    a1 = log_pis.reshape(B).astype(jnp.float32)
    plane0 = jnp.concatenate(
        [states.astype(jnp.float32), a0[:, None], a1[:, None]], axis=1)
    plane1 = jnp.pad(next_states.astype(jnp.float32), ((0, 0), (0, 2)))
    x_in = jnp.stack([plane0, plane1], axis=0)                 # (2, B, D+2)
    x_in = jnp.pad(x_in, ((0, 0), (0, pad), (0, 0)))           # (2, bp, D+2)

    def resident(a):
        # full-array block, constant index -> stays resident across the grid
        return pl.BlockSpec(a.shape, lambda i: (0, 0))

    flops = 2 * (2 * bp) * (dp2 * 2 * HIDDEN + (2 * HIDDEN) ** 2 + 2 * HIDDEN * 2)
    bytes_accessed = (x_in.size * 4 + bp * 4
                      + W1f.size * 4 + b1f.size * 4 + W2f.size * 2
                      + b2f.size * 4 + W3c.size * 4 + b3c.size * 4)

    out = pl.pallas_call(
        airl_discrim_kernel,
        grid=(n_tiles,),
        in_specs=[pl.BlockSpec((2, tb, dp2), lambda i: (0, i, 0)),
                  resident(W1f), resident(b1f),
                  resident(W2f), resident(b2f),
                  resident(W3c), resident(b3c)],
        out_specs=pl.BlockSpec((1, 1, tb), lambda i: (i, 0, 0)),
        out_shape=jax.ShapeDtypeStruct((n_tiles, 1, tb), jnp.float32),
        compiler_params=pltpu.CompilerParams(
            dimension_semantics=("parallel",),
            vmem_limit_bytes=32 * 1024 * 1024),
        cost_estimate=pl.CostEstimate(
            flops=flops, transcendentals=0, bytes_accessed=bytes_accessed),
    )(x_in, W1f, b1f, W2f, b2f, W3c, b3c)

    # (n_tiles, 1, tb) row-major flatten preserves batch order; drop pad rows.
    return out.reshape(-1)[:B]  # torch.flatten


# ---------------------------------------------------------------------------
# Parameter init + pure-JAX reference
# ---------------------------------------------------------------------------
def init_params(key, state_dim, hidden=HIDDEN):
    ks = jax.random.split(key, 12)

    def linear(kw, kb, fan_in, fan_out):
        bound = 1.0 / jnp.sqrt(fan_in)
        W = jax.random.uniform(kw, (fan_in, fan_out), jnp.float32, -bound, bound)
        b = jax.random.uniform(kb, (1, fan_out), jnp.float32, -bound, bound)
        return W, b

    gW1, gb1 = linear(ks[0], ks[1], state_dim, hidden)
    gW2, gb2 = linear(ks[2], ks[3], hidden, hidden)
    gW3, gb3 = linear(ks[4], ks[5], hidden, 1)
    hW1, hb1 = linear(ks[6], ks[7], state_dim, hidden)
    hW2, hb2 = linear(ks[8], ks[9], hidden, hidden)
    hW3, hb3 = linear(ks[10], ks[11], hidden, 1)
    return (gW1, gb1, gW2, gb2, gW3, gb3,
            hW1, hb1, hW2, hb2, hW3, hb3)


def reference_forward(states, dones, log_pis, next_states, params, gamma):
    (gW1, gb1, gW2, gb2, gW3, gb3,
     hW1, hb1, hW2, hb2, hW3, hb3) = params

    def mlp(x, W1, b1, W2, b2, W3, b3):
        h1 = jnp.maximum(x @ W1 + b1, 0.0)
        h2 = jnp.maximum(h1 @ W2 + b2, 0.0)
        return (h2 @ W3 + b3).reshape(-1)

    rs = mlp(states, gW1, gb1, gW2, gb2, gW3, gb3)
    vs = mlp(states, hW1, hb1, hW2, hb2, hW3, hb3)
    nvs = mlp(next_states, hW1, hb1, hW2, hb2, hW3, hb3)
    d = dones.astype(jnp.int32).astype(jnp.float32).reshape(-1)
    val = rs + gamma * (1.0 - d) * nvs - vs
    return val - log_pis.reshape(-1)


# ---------------------------------------------------------------------------
if __name__ == "__main__":
    GAMMA = 0.99
    D = 8  # state_shape[0]

    key = jax.random.PRNGKey(0)
    k_params, k_data = jax.random.split(key)
    params = init_params(k_params, D)

    def make_inputs(k, B):
        k_s, k_ns, k_d, k_lp = jax.random.split(k, 4)
        states = jax.random.normal(k_s, (B, D), jnp.float32)
        next_states = jax.random.normal(k_ns, (B, D), jnp.float32)
        dones = (jax.random.uniform(k_d, (B,)) > 0.5).astype(jnp.float32)
        log_pis = jax.random.normal(k_lp, (B,), jnp.float32)
        return states, dones, log_pis, next_states

    TOL = dict(atol=2e-2, rtol=2e-2)  # bf16 layer-2 matmul

    # Case 1: tiny batch from the spec (B=2), single grid step.
    k1, k2, k3 = jax.random.split(k_data, 3)
    s, d, lp, ns = make_inputs(k1, 2)
    out = jax.block_until_ready(
        airl_discrim_forward(s, d, lp, ns, params, GAMMA))
    ref = reference_forward(s, d, lp, ns, params, GAMMA)
    assert out.shape == (2,)
    assert jnp.allclose(out, ref, **TOL), (out, ref)

    # Case 2: multi-tile grid with padding (B=20, forced tile of 8).
    s, d, lp, ns = make_inputs(k2, 20)
    out2 = jax.block_until_ready(
        airl_discrim_forward(s, d, lp, ns, params, GAMMA, max_tile=8))
    ref2 = reference_forward(s, d, lp, ns, params, GAMMA)
    assert out2.shape == (20,)
    assert jnp.allclose(out2, ref2, **TOL), (out2, ref2)

    # Case 3: default tiling path (B=300 -> 2 grid steps, pad rows dropped).
    s, d, lp, ns = make_inputs(k3, 300)
    out3 = jax.block_until_ready(
        airl_discrim_forward(s, d, lp, ns, params, GAMMA))
    ref3 = reference_forward(s, d, lp, ns, params, GAMMA)
    assert out3.shape == (300,)
    assert jnp.allclose(out3, ref3, **TOL), (out3, ref3)

    print("KERNEL_OK")
</pallas_src>

<mosaic_0001>
module attributes {stable_mosaic.version = 11 : i64} {
  func.func @airl_discrim_kernel(%arg0: i32, %arg1: memref<2x8x10xf32, #tpu.memory_space<vmem>>, %arg2: memref<10x128xf32, #tpu.memory_space<vmem>>, %arg3: memref<1x128xf32, #tpu.memory_space<vmem>>, %arg4: memref<128x128xbf16, #tpu.memory_space<vmem>>, %arg5: memref<1x128xf32, #tpu.memory_space<vmem>>, %arg6: memref<128x2xf32, #tpu.memory_space<vmem>>, %arg7: memref<1x2xf32, #tpu.memory_space<vmem>>, %arg8: memref<1x1x8xf32, #tpu.memory_space<vmem>>) attributes {dimension_semantics = [#tpu.dimension_semantics<parallel>], iteration_bounds = array<i64: 1>, scalar_prefetch = 0 : i64, scratch_operands = 0 : i64, tpu.core_type = #tpu.core_type<tc>, window_params = [{transform_indices = @transform_0, window_bounds = array<i64: 2, 8, 10>}, {pipeline_mode = #tpu.pipeline_mode<synchronous>, transform_indices = @transform_1, window_bounds = array<i64: 10, 128>}, {pipeline_mode = #tpu.pipeline_mode<synchronous>, transform_indices = @transform_2, window_bounds = array<i64: 1, 128>}, {pipeline_mode = #tpu.pipeline_mode<synchronous>, transform_indices = @transform_3, window_bounds = array<i64: 128, 128>}, {pipeline_mode = #tpu.pipeline_mode<synchronous>, transform_indices = @transform_4, window_bounds = array<i64: 1, 128>}, {pipeline_mode = #tpu.pipeline_mode<synchronous>, transform_indices = @transform_5, window_bounds = array<i64: 128, 2>}, {pipeline_mode = #tpu.pipeline_mode<synchronous>, transform_indices = @transform_6, window_bounds = array<i64: 1, 2>}, {transform_indices = @transform_7, window_bounds = array<i64: 1, 1, 8>}]} {
    %c0 = arith.constant 0 : index
    %c0_0 = arith.constant 0 : index
    %c0_1 = arith.constant 0 : index
    %0 = vector.load %arg1[%c0, %c0_0, %c0_1] : memref<2x8x10xf32, #tpu.memory_space<vmem>>, vector<2x8x10xf32>
    %1 = vector.shape_cast %0 : vector<2x8x10xf32> to vector<16x10xf32>
    %c0_2 = arith.constant 0 : index
    %c0_3 = arith.constant 0 : index
    %2 = vector.load %arg2[%c0_2, %c0_3] : memref<10x128xf32, #tpu.memory_space<vmem>>, vector<10x128xf32>
    %cst = arith.constant dense<0.000000e+00> : vector<16x128xf32>
    %3 = tpu.matmul %1, %2, %cst {dimension_numbers = #tpu.dot_dimension_numbers<[1], [0], [0], [1], [0, 0, 1, 1], [], []>} : vector<16x10xf32>, vector<10x128xf32>, vector<16x128xf32> -> vector<16x128xf32>
    %c0_4 = arith.constant 0 : index
    %c0_5 = arith.constant 0 : index
    %4 = vector.load %arg3[%c0_4, %c0_5] : memref<1x128xf32, #tpu.memory_space<vmem>>, vector<1x128xf32>
    %5 = vector.broadcast %4 : vector<1x128xf32> to vector<16x128xf32>
    %6 = arith.addf %3, %5 : vector<16x128xf32>
    %cst_6 = arith.constant 0.000000e+00 : f32
    %7 = vector.broadcast %cst_6 : f32 to vector<16x128xf32>
    %8 = arith.maximumf %6, %7 : vector<16x128xf32>
    %9 = arith.truncf %8 : vector<16x128xf32> to vector<16x128xbf16>
    %c0_7 = arith.constant 0 : index
    %c0_8 = arith.constant 0 : index
    %10 = vector.load %arg4[%c0_7, %c0_8] : memref<128x128xbf16, #tpu.memory_space<vmem>>, vector<128x128xbf16>
    %cst_9 = arith.constant dense<0.000000e+00> : vector<16x128xf32>
    %11 = tpu.matmul %9, %10, %cst_9 {dimension_numbers = #tpu.dot_dimension_numbers<[1], [0], [0], [1], [0, 0, 1, 1], [], []>} : vector<16x128xbf16>, vector<128x128xbf16>, vector<16x128xf32> -> vector<16x128xf32>
    %c0_10 = arith.constant 0 : index
    %c0_11 = arith.constant 0 : index
    %12 = vector.load %arg5[%c0_10, %c0_11] : memref<1x128xf32, #tpu.memory_space<vmem>>, vector<1x128xf32>
    %13 = vector.broadcast %12 : vector<1x128xf32> to vector<16x128xf32>
    %14 = arith.addf %11, %13 : vector<16x128xf32>
    %cst_12 = arith.constant 0.000000e+00 : f32
    %15 = vector.broadcast %cst_12 : f32 to vector<16x128xf32>
    %16 = arith.maximumf %14, %15 : vector<16x128xf32>
    %c0_13 = arith.constant 0 : index
    %c0_14 = arith.constant 0 : index
    %17 = vector.load %arg6[%c0_13, %c0_14] : memref<128x2xf32, #tpu.memory_space<vmem>>, vector<128x2xf32>
    %cst_15 = arith.constant dense<0.000000e+00> : vector<16x2xf32>
    %18 = tpu.matmul %16, %17, %cst_15 {dimension_numbers = #tpu.dot_dimension_numbers<[1], [0], [0], [1], [0, 0, 1, 1], [], []>} : vector<16x128xf32>, vector<128x2xf32>, vector<16x2xf32> -> vector<16x2xf32>
    %c0_16 = arith.constant 0 : index
    %c0_17 = arith.constant 0 : index
    %19 = vector.load %arg7[%c0_16, %c0_17] : memref<1x2xf32, #tpu.memory_space<vmem>>, vector<1x2xf32>
    %20 = vector.broadcast %19 : vector<1x2xf32> to vector<16x2xf32>
    %21 = arith.addf %18, %20 : vector<16x2xf32>
    %22 = vector.extract_strided_slice %21 {offsets = [0, 0], sizes = [8, 1], strides = [1, 1]} : vector<16x2xf32> to vector<8x1xf32>
    %23 = vector.extract_strided_slice %21 {offsets = [8, 1], sizes = [8, 1], strides = [1, 1]} : vector<16x2xf32> to vector<8x1xf32>
    %24 = vector.extract_strided_slice %0 {offsets = [0, 0, 8], sizes = [1, 8, 1], strides = [1, 1, 1]} : vector<2x8x10xf32> to vector<1x8x1xf32>
    %25 = vector.shape_cast %24 : vector<1x8x1xf32> to vector<8x1xf32>
    %26 = vector.extract_strided_slice %0 {offsets = [0, 0, 9], sizes = [1, 8, 1], strides = [1, 1, 1]} : vector<2x8x10xf32> to vector<1x8x1xf32>
    %27 = vector.shape_cast %26 : vector<1x8x1xf32> to vector<8x1xf32>
    %28 = arith.mulf %25, %23 : vector<8x1xf32>
    %29 = arith.addf %22, %28 : vector<8x1xf32>
    %30 = arith.subf %29, %27 : vector<8x1xf32>
    %31 = tpu.transpose %30, [1, 0] : vector<8x1xf32> -> vector<1x8xf32>
    %c0_18 = arith.constant 0 : index
    %c0_19 = arith.constant 0 : index
    %c0_20 = arith.constant 0 : index
    %32 = vector.load %arg8[%c0_18, %c0_19, %c0_20] : memref<1x1x8xf32, #tpu.memory_space<vmem>>, vector<1x1x8xf32>
    %33 = vector.shape_cast %32 : vector<1x1x8xf32> to vector<1x8xf32>
    %34 = vector.shape_cast %31 : vector<1x8xf32> to vector<1x1x8xf32>
    tpu.vector_store %arg8[%c0_18, %c0_19, %c0_20], %34 {strides = array<i32>} : memref<1x1x8xf32, #tpu.memory_space<vmem>>, vector<1x1x8xf32>,
    return
  }
  func.func @transform_0(%arg0: i32) -> (i32, i32, i32) {
    %c0_i32 = arith.constant 0 : i32
    %c0_i32_0 = arith.constant 0 : i32
    %c0_i32_1 = arith.constant 0 : i32
    return %c0_i32, %arg0, %c0_i32_0 : i32, i32, i32
  }
  func.func @transform_1(%arg0: i32) -> (i32, i32) {
    %c0_i32 = arith.constant 0 : i32
    %c0_i32_0 = arith.constant 0 : i32
    %c0_i32_1 = arith.constant 0 : i32
    return %c0_i32, %c0_i32_0 : i32, i32
  }
  func.func @transform_2(%arg0: i32) -> (i32, i32) {
    %c0_i32 = arith.constant 0 : i32
    %c0_i32_0 = arith.constant 0 : i32
    %c0_i32_1 = arith.constant 0 : i32
    return %c0_i32, %c0_i32_0 : i32, i32
  }
  func.func @transform_3(%arg0: i32) -> (i32, i32) {
    %c0_i32 = arith.constant 0 : i32
    %c0_i32_0 = arith.constant 0 : i32
    %c0_i32_1 = arith.constant 0 : i32
    return %c0_i32, %c0_i32_0 : i32, i32
  }
  func.func @transform_4(%arg0: i32) -> (i32, i32) {
    %c0_i32 = arith.constant 0 : i32
    %c0_i32_0 = arith.constant 0 : i32
    %c0_i32_1 = arith.constant 0 : i32
    return %c0_i32, %c0_i32_0 : i32, i32
  }
  func.func @transform_5(%arg0: i32) -> (i32, i32) {
    %c0_i32 = arith.constant 0 : i32
    %c0_i32_0 = arith.constant 0 : i32
    %c0_i32_1 = arith.constant 0 : i32
    return %c0_i32, %c0_i32_0 : i32, i32
  }
  func.func @transform_6(%arg0: i32) -> (i32, i32) {
    %c0_i32 = arith.constant 0 : i32
    %c0_i32_0 = arith.constant 0 : i32
    %c0_i32_1 = arith.constant 0 : i32
    return %c0_i32, %c0_i32_0 : i32, i32
  }
  func.func @transform_7(%arg0: i32) -> (i32, i32, i32) {
    %c0_i32 = arith.constant 0 : i32
    %c0_i32_0 = arith.constant 0 : i32
    %c0_i32_1 = arith.constant 0 : i32
    return %arg0, %c0_i32, %c0_i32_0 : i32, i32, i32
  }
}

</mosaic_0001>

<llo_original>
// kernel: tpu_custom_call.1
$region0: #{tpu_custom_call.1}
  #allocation0 [shape = 'u32[]', space=smem, size = 0x4, offset = 0x4, fixed_abs, tag = 'smem constant byte address 0x4 - core index']
  #allocation1 [shape = 'u32[144,128]{1,0:T(1,128)}', space=vmem, size = 0x12000, scoped, tag = 'internal scratch']
  %s0 = inlined_call_operand.vmem [shape: f32[2,8,10], index: 0, kind: input, shape index: {}]
  %s1 = inlined_call_operand.vmem [shape: f32[10,128], index: 1, kind: input, shape index: {}]
  %s2 = inlined_call_operand.vmem [shape: f32[1,128], index: 2, kind: input, shape index: {}]
  %s3 = inlined_call_operand.vmem [shape: bf16[128,128], index: 3, kind: input, shape index: {}]
  %s4 = inlined_call_operand.vmem [shape: f32[1,128], index: 4, kind: input, shape index: {}]
  %s5 = inlined_call_operand.vmem [shape: f32[128,2], index: 5, kind: input, shape index: {}]
  %s6 = inlined_call_operand.vmem [shape: f32[1,2], index: 6, kind: input, shape index: {}]
  %s7 = inlined_call_operand.hbm [shape: f32[1,1,8], index: 7, kind: output, shape index: {}]
  %s8 = sld [smem:[#allocation0]]
  $region38: #{tpu_custom_call.1} parent=0
    _
  %s10 = ssub.s32 1, %s8
  %s11 = scalar_select 0, %s10, %s8
  $region1: #{tpu_custom_call.1} parent=0
    #allocation2 [shape = 'u8[512]{0}', space=vmem, size = 0x400, scoped, tag = 'output window, operand 0, single buffered']
    #allocation3 [shape = 's32[1]{0}', space=sflag, size = 0x4, scoped, tag = 'scoped memory for tpu_custom_call.1']
    %12 = vsyncpa [#allocation3], 0
    // Predicated region
    $region2: #{tpu_custom_call.1} parent=1 // pred_check
      _
    $region3: #{tpu_custom_call.1} parent=1 // pred_check_branch
      %14 = sbr.rel (0) target = $region5
    $region4: #{tpu_custom_call.1} parent=1 // pred_region
      _
    $region5: #{tpu_custom_call.1} parent=1 // pred_fallthru
      _
    // Predicated region
    $region6: #{tpu_custom_call.1} parent=1 // pred_check
      _
    $region7: #{tpu_custom_call.1} parent=1 // pred_check_branch
      %16 = sbr.rel (0) target = $region9
    $region8: #{tpu_custom_call.1} parent=1 // pred_region
      _
    $region9: #{tpu_custom_call.1} parent=1 // pred_fallthru
      _
    // Predicated region
    $region10: #{tpu_custom_call.1} parent=1 // pred_check
      _
    $region11: #{tpu_custom_call.1} parent=1 // pred_check_branch
      %18 = sbr.rel (0) target = $region13
    $region12: #{tpu_custom_call.1} parent=1 // pred_region
      _
    $region13: #{tpu_custom_call.1} parent=1 // pred_fallthru
      _
    // Predicated region
    $region14: #{tpu_custom_call.1} parent=1 // pred_check
      _
    $region15: #{tpu_custom_call.1} parent=1 // pred_check_branch
      %20 = sbr.rel (0) target = $region17
    $region16: #{tpu_custom_call.1} parent=1 // pred_region
      _
    $region17: #{tpu_custom_call.1} parent=1 // pred_fallthru
      _
    // Predicated region
    $region18: #{tpu_custom_call.1} parent=1 // pred_check
      _
    $region19: #{tpu_custom_call.1} parent=1 // pred_check_branch
      %22 = sbr.rel (0) target = $region21
    $region20: #{tpu_custom_call.1} parent=1 // pred_region
      _
    $region21: #{tpu_custom_call.1} parent=1 // pred_fallthru
      _
    // Predicated region
    $region22: #{tpu_custom_call.1} parent=1 // pred_check
      _
    $region23: #{tpu_custom_call.1} parent=1 // pred_check_branch
      %24 = sbr.rel (0) target = $region25
    $region24: #{tpu_custom_call.1} parent=1 // pred_region
      _
    $region25: #{tpu_custom_call.1} parent=1 // pred_fallthru
      _
    // Predicated region
    $region26: #{tpu_custom_call.1} parent=1 // pred_check
      _
    $region27: #{tpu_custom_call.1} parent=1 // pred_check_branch
      %26 = sbr.rel (0) target = $region29
    $region28: #{tpu_custom_call.1} parent=1 // pred_region
      _
    $region29: #{tpu_custom_call.1} parent=1 // pred_fallthru
      _
    %v28 = vld [vmem:[%s0] sm:$0xff]
    %v29 = vld [vmem:[%s0 + $0x8] sm:$0xff]
    %v30 = vld [vmem:[%s1] sm:$0xff]
    %v31 = vld [vmem:[%s1 + $0x8] sm:$0x3]
    %v32 = vld [vmem:[%s2] sm:$0x1]
    %v34 = vlaneseq
    %v35 = vshrl.u32 %v34, 7
    %v36 = vsub.s32 0, %v35
    %v37 = vrot.slane %v32, %v36
    %vm39 = vcmask 80896
    %v41 = vsel %vm39, %v28, 0
    %v44 = vsel %vm39, %v29, 0
    %vm46 = vcmask 1041408
    %v48 = vsel %vm46, %v31, 0
    %50 = vmatprep.subr.mxu0 0.0
    %51 = vmatpush1.msra.mxu0 0.0
    %52 = vmatprep.subr.mxu0 0.0
    %53 = vmatpush1.msra.mxu0 0.0
    %54 = vmatprep.subr.mxu0 0.0
    %55 = vmatpush1.msra.mxu0 0.0
    %56 = vmatprep.subr.mxu0 0.0
    %57 = vmatpush1.msra.mxu0 0.0
    %58 = vmatprep.subr.mxu0 0.0
    %59 = vmatpush1.msra.mxu0 0.0
    %60 = vmatprep.subr.mxu0 0.0
    %61 = vmatpush1.msra.mxu0 0.0
    %62 = vmatprep.subr.mxu0 0.0
    %63 = vmatpush1.msra.mxu0 0.0
    %64 = vmatprep.subr.mxu0 0.0
    %65 = vmatpush1.msra.mxu0 0.0
    %66 = vmatprep.subr.mxu0 0.0
    %67 = vmatpush1.msra.mxu0 0.0
    %68 = vmatprep.subr.mxu0 0.0
    %69 = vmatpush1.msra.mxu0 0.0
    %70 = vmatprep.subr.mxu0 0.0
    %71 = vmatpush1.msra.mxu0 0.0
    %72 = vmatprep.subr.mxu0 0.0
    %73 = vmatpush1.msra.mxu0 0.0
    %74 = vmatprep.subr.mxu0 0.0
    %75 = vmatpush1.msra.mxu0 0.0
    %76 = vmatprep.subr.mxu0 0.0
    %77 = vmatpush1.msra.mxu0 0.0
    %78 = vmatprep.subr.mxu0 0.0
    %79 = vmatpush1.msra.mxu0 %v48
    %80 = vmatprep.subr.mxu0 0.0
    %81 = vmatpush1.msra.mxu0 %v30
    %82 = vmatprep.subr.mxu0 0.0
    %83 = vmatpush2.msra.mxu0 0.0
    %84 = vmatprep.subr.mxu0 0.0
    %85 = vmatpush2.msra.mxu0 0.0
    %86 = vmatprep.subr.mxu0 0.0
    %87 = vmatpush2.msra.mxu0 0.0
    %88 = vmatprep.subr.mxu0 0.0
    %89 = vmatpush2.msra.mxu0 0.0
    %90 = vmatprep.subr.mxu0 0.0
    %91 = vmatpush2.msra.mxu0 0.0
    %92 = vmatprep.subr.mxu0 0.0
    %93 = vmatpush2.msra.mxu0 0.0
    %94 = vmatprep.subr.mxu0 0.0
    %95 = vmatpush2.msra.mxu0 0.0
    %96 = vmatprep.subr.mxu0 0.0
    %97 = vmatpush2.msra.mxu0 0.0
    %98 = vmatprep.subr.mxu0 0.0
    %99 = vmatpush2.msra.mxu0 0.0
    %100 = vmatprep.subr.mxu0 0.0
    %101 = vmatpush2.msra.mxu0 0.0
    %102 = vmatprep.subr.mxu0 0.0
    %103 = vmatpush2.msra.mxu0 0.0
    %104 = vmatprep.subr.mxu0 0.0
    %105 = vmatpush2.msra.mxu0 0.0
    %106 = vmatprep.subr.mxu0 0.0
    %107 = vmatpush2.msra.mxu0 0.0
    %108 = vmatprep.subr.mxu0 0.0
    %109 = vmatpush2.msra.mxu0 0.0
    %110 = vmatprep.subr.mxu0 0.0
    %111 = vmatpush2.msra.mxu0 0.0
    %112 = vmatprep.subr.mxu0 0.0
    %113 = vmatpush2.msra.mxu0 0.0
    %114 = vmatprep.mubr.f32.mxu0 0.0
    %115 = vmatmul.mubr.f32.gmra.mxu0 %v41
    %v116 = vpop.f32.mrf.mxu0
    %v117 = vadd.f32 %v37, %v116
    %v118 = vpop.f32.mrf.mxu0
    %119 = vmatprep.mubr.f32.mxu0 0.0
    %120 = vmatmul.mubr.f32.gmra.mxu0 %v44
    %v121 = vpop.f32.mrf.mxu0
    %v122 = vadd.f32 %v37, %v121
    %v123 = vpop.f32.mrf.mxu0
    %124 = vdwg.mxu0
    %v125 = vmax.f32 %v117, 0.0
    %v126 = vmax.f32 %v122, 0.0
    %v127 = vpack.c.bf16 %v126, %v125
    %v128 = vld [vmem:[%s3] sm:$0xf]
    %v129 = vld [vmem:[%s3 + $0x4] sm:$0xf]
    %v130 = vld [vmem:[%s3 + $0x8] sm:$0xf]
    %v131 = vld [vmem:[%s3 + $0xc] sm:$0xf]
    %v132 = vld [vmem:[%s3 + $0x10] sm:$0xf]
    %v133 = vld [vmem:[%s3 + $0x14] sm:$0xf]
    %v134 = vld [vmem:[%s3 + $0x18] sm:$0xf]
    %v135 = vld [vmem:[%s3 + $0x1c] sm:$0xf]
    %v136 = vld [vmem:[%s3 + $0x20] sm:$0xf]
    %v137 = vld [vmem:[%s3 + $0x24] sm:$0xf]
    %v138 = vld [vmem:[%s3 + $0x28] sm:$0xf]
    %v139 = vld [vmem:[%s3 + $0x2c] sm:$0xf]
    %v140 = vld [vmem:[%s3 + $0x30] sm:$0xf]
    %v141 = vld [vmem:[%s3 + $0x34] sm:$0xf]
    %v142 = vld [vmem:[%s3 + $0x38] sm:$0xf]
    %v143 = vld [vmem:[%s3 + $0x3c] sm:$0xf]
    %v144 = vld [vmem:[%s4] sm:$0x1]
    %v146 = vlaneseq
    %v147 = vshrl.u32 %v146, 7
    %v148 = vsub.s32 0, %v147
    %v149 = vrot.slane %v144, %v148
    %v167 = vunpack.c.l.b16 %v128
    %v168 = vunpack.c.l.b16 %v129
    %v169 = vunpack.c.l.b16 %v130
    %v170 = vunpack.c.l.b16 %v131
    %v171 = vunpack.c.l.b16 %v132
    %v172 = vunpack.c.l.b16 %v133
    %v173 = vunpack.c.l.b16 %v134
    %v174 = vunpack.c.l.b16 %v135
    %v175 = vunpack.c.l.b16 %v136
    %v176 = vunpack.c.l.b16 %v137
    %v177 = vunpack.c.l.b16 %v138
    %v178 = vunpack.c.l.b16 %v139
    %v179 = vunpack.c.l.b16 %v140
    %v180 = vunpack.c.l.b16 %v141
    %v181 = vunpack.c.l.b16 %v142
    %v182 = vunpack.c.l.b16 %v143
    %v183 = vpack.c.b16 %v168, %v167
    %v184 = vpack.c.b16 %v170, %v169
    %v185 = vpack.c.b16 %v172, %v171
    %v186 = vpack.c.b16 %v174, %v173
    %v187 = vpack.c.b16 %v176, %v175
    %v188 = vpack.c.b16 %v178, %v177
    %v189 = vpack.c.b16 %v180, %v179
    %v190 = vpack.c.b16 %v182, %v181
    %199 = vmatprep.subr.bf16.mxu0 0
    %200 = vmatpush1.bf16.msra.mxu0 %v190
    %201 = vmatprep.subr.bf16.mxu0 0
    %202 = vmatpush1.bf16.msra.mxu0 %v189
    %203 = vmatprep.subr.bf16.mxu0 0
    %204 = vmatpush1.bf16.msra.mxu0 %v188
    %205 = vmatprep.subr.bf16.mxu0 0
    %206 = vmatpush1.bf16.msra.mxu0 %v187
    %207 = vmatprep.subr.bf16.mxu0 0
    %208 = vmatpush1.bf16.msra.mxu0 %v186
    %209 = vmatprep.subr.bf16.mxu0 0
    %210 = vmatpush1.bf16.msra.mxu0 %v185
    %211 = vmatprep.subr.bf16.mxu0 0
    %212 = vmatpush1.bf16.msra.mxu0 %v184
    %213 = vmatprep.subr.bf16.mxu0 0
    %214 = vmatpush1.bf16.msra.mxu0 %v183
    %215 = vmatprep.subr.bf16.mxu0 0
    %216 = vmatpush2.bf16.msra.mxu0 0
    %217 = vmatprep.subr.bf16.mxu0 0
    %218 = vmatpush2.bf16.msra.mxu0 0
    %219 = vmatprep.subr.bf16.mxu0 0
    %220 = vmatpush2.bf16.msra.mxu0 0
    %221 = vmatprep.subr.bf16.mxu0 0
    %222 = vmatpush2.bf16.msra.mxu0 0
    %223 = vmatprep.subr.bf16.mxu0 0
    %224 = vmatpush2.bf16.msra.mxu0 0
    %225 = vmatprep.subr.bf16.mxu0 0
    %226 = vmatpush2.bf16.msra.mxu0 0
    %227 = vmatprep.subr.bf16.mxu0 0
    %228 = vmatpush2.bf16.msra.mxu0 0
    %229 = vmatprep.subr.bf16.mxu0 0
    %230 = vmatpush2.bf16.msra.mxu0 0
    %231 = vmatprep.mubr.bf16.mxu0 0
    %232 = vmatmul.mubr.bf16.gmra.mxu0 %v127
    %v233 = vpop.f32.mrf.mxu0
    %v234 = vadd.f32 %v149, %v233
    %v235 = vpop.f32.mrf.mxu0
    %v236 = vpop.f32.mrf.mxu0
    %v237 = vadd.f32 %v149, %v236
    %v238 = vpop.f32.mrf.mxu0
    %239 = vdwg.mxu0
    %v240 = vmax.f32 %v234, 0.0
    %v241 = vmax.f32 %v237, 0.0
    %v242 = vld [vmem:[%s5] sm:$0xff]
    %v243 = vld [vmem:[%s5 + $0x8] sm:$0xff]
    %v244 = vld [vmem:[%s5 + $0x10] sm:$0xff]
    %v245 = vld [vmem:[%s5 + $0x18] sm:$0xff]
    %v246 = vld [vmem:[%s5 + $0x20] sm:$0xff]
    %v247 = vld [vmem:[%s5 + $0x28] sm:$0xff]
    %v248 = vld [vmem:[%s5 + $0x30] sm:$0xff]
    %v249 = vld [vmem:[%s5 + $0x38] sm:$0xff]
    %v250 = vld [vmem:[%s5 + $0x40] sm:$0xff]
    %v251 = vld [vmem:[%s5 + $0x48] sm:$0xff]
    %v252 = vld [vmem:[%s5 + $0x50] sm:$0xff]
    %v253 = vld [vmem:[%s5 + $0x58] sm:$0xff]
    %v254 = vld [vmem:[%s5 + $0x60] sm:$0xff]
    %v255 = vld [vmem:[%s5 + $0x68] sm:$0xff]
    %v256 = vld [vmem:[%s5 + $0x70] sm:$0xff]
    %v257 = vld [vmem:[%s5 + $0x78] sm:$0xff]
    %v258 = vld [vmem:[%s6] sm:$0x1]
    %v260 = vlaneseq
    %v261 = vshrl.u32 %v260, 7
    %v262 = vsub.s32 0, %v261
    %v263 = vrot.slane %v258, %v262
    %265 = vmatprep.subr.mxu0 0.0
    %266 = vmatpush1.msra.mxu0 %v257
    %267 = vmatprep.subr.mxu0 0.0
    %268 = vmatpush1.msra.mxu0 %v256
    %269 = vmatprep.subr.mxu0 0.0
    %270 = vmatpush1.msra.mxu0 %v255
    %271 = vmatprep.subr.mxu0 0.0
    %272 = vmatpush1.msra.mxu0 %v254
    %273 = vmatprep.subr.mxu0 0.0
    %274 = vmatpush1.msra.mxu0 %v253
    %275 = vmatprep.subr.mxu0 0.0
    %276 = vmatpush1.msra.mxu0 %v252
    %277 = vmatprep.subr.mxu0 0.0
    %278 = vmatpush1.msra.mxu0 %v251
    %279 = vmatprep.subr.mxu0 0.0
    %280 = vmatpush1.msra.mxu0 %v250
    %281 = vmatprep.subr.mxu0 0.0
    %282 = vmatpush1.msra.mxu0 %v249
    %283 = vmatprep.subr.mxu0 0.0
    %284 = vmatpush1.msra.mxu0 %v248
    %285 = vmatprep.subr.mxu0 0.0
    %286 = vmatpush1.msra.mxu0 %v247
    %287 = vmatprep.subr.mxu0 0.0
    %288 = vmatpush1.msra.mxu0 %v246
    %289 = vmatprep.subr.mxu0 0.0
    %290 = vmatpush1.msra.mxu0 %v245
    %291 = vmatprep.subr.mxu0 0.0
    %292 = vmatpush1.msra.mxu0 %v244
    %293 = vmatprep.subr.mxu0 0.0
    %294 = vmatpush1.msra.mxu0 %v243
    %295 = vmatprep.subr.mxu0 0.0
    %296 = vmatpush1.msra.mxu0 %v242
    %297 = vmatprep.subr.mxu0 0.0
    %298 = vmatpush2.msra.mxu0 0.0
    %299 = vmatprep.subr.mxu0 0.0
    %300 = vmatpush2.msra.mxu0 0.0
    %301 = vmatprep.subr.mxu0 0.0
    %302 = vmatpush2.msra.mxu0 0.0
    %303 = vmatprep.subr.mxu0 0.0
    %304 = vmatpush2.msra.mxu0 0.0
    %305 = vmatprep.subr.mxu0 0.0
    %306 = vmatpush2.msra.mxu0 0.0
    %307 = vmatprep.subr.mxu0 0.0
    %308 = vmatpush2.msra.mxu0 0.0
    %309 = vmatprep.subr.mxu0 0.0
    %310 = vmatpush2.msra.mxu0 0.0
    %311 = vmatprep.subr.mxu0 0.0
    %312 = vmatpush2.msra.mxu0 0.0
    %313 = vmatprep.subr.mxu0 0.0
    %314 = vmatpush2.msra.mxu0 0.0
    %315 = vmatprep.subr.mxu0 0.0
    %316 = vmatpush2.msra.mxu0 0.0
    %317 = vmatprep.subr.mxu0 0.0
    %318 = vmatpush2.msra.mxu0 0.0
    %319 = vmatprep.subr.mxu0 0.0
    %320 = vmatpush2.msra.mxu0 0.0
    %321 = vmatprep.subr.mxu0 0.0
    %322 = vmatpush2.msra.mxu0 0.0
    %323 = vmatprep.subr.mxu0 0.0
    %324 = vmatpush2.msra.mxu0 0.0
    %325 = vmatprep.subr.mxu0 0.0
    %326 = vmatpush2.msra.mxu0 0.0
    %327 = vmatprep.subr.mxu0 0.0
    %328 = vmatpush2.msra.mxu0 0.0
    %329 = vmatprep.mubr.f32.mxu0 0.0
    %330 = vmatmul.mubr.f32.gmra.mxu0 %v240
    %v331 = vpop.f32.mrf.mxu0
    %v332 = vadd.f32 %v263, %v331
    %v333 = vpop.f32.mrf.mxu0
    %334 = vmatprep.mubr.f32.mxu0 0.0
    %335 = vmatmul.mubr.f32.gmra.mxu0 %v241
    %v336 = vpop.f32.mrf.mxu0
    %v337 = vadd.f32 %v263, %v336
    %v338 = vpop.f32.mrf.mxu0
    %339 = vdwg.mxu0
    %341 = vrot.lane.b32.xlu0 %v337, 7
    %v342 = vpop.permute.xlu0 %341
    %v344 = vmul.f32 %v28, %v342
    %346 = vrot.lane.b32.xlu0 %v344, 120
    %v347 = vpop.permute.xlu0 %346
    %v349 = vadd.f32 %v332, %v347
    %350 = vrot.lane.b32.xlu0 %v28, 119
    %v351 = vpop.permute.xlu0 %350
    %v353 = vsub.f32 %v349, %v351
    %354 = vxpose.xlu0.b32.start [1/16] %v353, 128
    %355 = vxpose.xlu0.b32.cont [2/16] 0.0, 128
    %356 = vxpose.xlu0.b32.cont [3/16] 0.0, 128
    %357 = vxpose.xlu0.b32.cont [4/16] 0.0, 128
    %358 = vxpose.xlu0.b32.cont [5/16] 0.0, 128
    %359 = vxpose.xlu0.b32.cont [6/16] 0.0, 128
    %360 = vxpose.xlu0.b32.cont [7/16] 0.0, 128
    %361 = vxpose.xlu0.b32.cont [8/16] 0.0, 128
    %362 = vxpose.xlu0.b32.cont [9/16] 0.0, 128
    %363 = vxpose.xlu0.b32.cont [10/16] 0.0, 128
    %364 = vxpose.xlu0.b32.cont [11/16] 0.0, 128
    %365 = vxpose.xlu0.b32.cont [12/16] 0.0, 128
    %366 = vxpose.xlu0.b32.cont [13/16] 0.0, 128
    %367 = vxpose.xlu0.b32.cont [14/16] 0.0, 128
    %368 = vxpose.xlu0.b32.cont [15/16] 0.0, 128
    %369 = vxpose.xlu0.b32.end [16/16] 0.0, 128
    %v370 = vpop.trf.xlu0
    %v371 = vpop.trf.xlu0
    %v372 = vpop.trf.xlu0
    %v373 = vpop.trf.xlu0
    %v374 = vpop.trf.xlu0
    %v375 = vpop.trf.xlu0
    %v376 = vpop.trf.xlu0
    %v377 = vpop.trf.xlu0
    %v378 = vpop.trf.xlu0
    %v379 = vpop.trf.xlu0
    %v380 = vpop.trf.xlu0
    %v381 = vpop.trf.xlu0
    %v382 = vpop.trf.xlu0
    %v383 = vpop.trf.xlu0
    %v384 = vpop.trf.xlu0
    %v385 = vpop.trf.xlu0
    %vm386 = vcmask 57344
    %387 = vst.msk [vmem:[#allocation2] sm:$0x1] %vm386, %v370
    // Predicated region
    $region30: #{tpu_custom_call.1} parent=1 // pred_check
      _
    $region31: #{tpu_custom_call.1} parent=1 // pred_check_branch
      %389 = sbr.rel (0) target = $region33
    $region32: #{tpu_custom_call.1} parent=1 // pred_region
      %s391 = ssub.s32 16, 16
      %392 = vsyncadd [#allocation3], %s391
      %s394 = sshll.u32 [#allocation2], 4
      %s395 = int_to_ptr.vmem [resolvable:$true] %s394
      %397 = dma.vmem_to_hbm [thread:$0]  %s395, 16, %s7, [#allocation3]
    $region33: #{tpu_custom_call.1} parent=1 // pred_fallthru
      _
    // Predicated region
    $region34: #{tpu_custom_call.1} parent=1 // pred_check
      _
    $region35: #{tpu_custom_call.1} parent=1 // pred_check_branch
      %399 = sbr.rel (0) target = $region37
    $region36: #{tpu_custom_call.1} parent=1 // pred_region
      %400 = dma.done [#allocation3], 16
    $region37: #{tpu_custom_call.1} parent=1 // pred_fallthru
      _
    %401 = vsyncpa [#allocation3], 1

</llo_original>
